<compile_context>
chip_gen: v5e
topology: v5e:2x2
jax: 0.10.0
libtpu: 0.0.40
codegen_flags: <defaults>
</compile_context>

<pallas_src>
import math

import jax
import jax.numpy as jnp
from jax.experimental import pallas as pl
from jax.experimental.pallas import tpu as pltpu


def _round_up(a, b):
    return ((a + b - 1) // b) * b


def _choose_tiles(n, block_m, block_k):
    """Pick (tile_m, tile_k, n_p): 128-aligned, tile_k % tile_m == 0, n_p % tile_k == 0."""
    n128 = _round_up(max(n, 1), 128)
    tile_m = min(_round_up(max(block_m, 128), 128), n128)
    tile_k = min(_round_up(max(block_k, 128), 128), n128)
    tile_k = _round_up(tile_k, tile_m)          # one padded N divides both tiles
    n_p = _round_up(n, tile_k)
    # Prefer >= 2 row tiles (v7x has 2 TensorCores on the "parallel" row axis)
    # when that does not break divisibility of the padded N.
    if n_p // tile_m < 2 and tile_m > 128:
        half = _round_up(tile_m // 2, 128)
        if tile_k % half == 0:
            tile_m = half
    return tile_m, tile_k, n_p


def _support_kernel(x_ref, w_ref, s_ref):
    # support tile = X_tile @ W  (MXU, bf16 inputs, f32 accumulate, bf16 output
    # so stage 2 gets native bf16 MXU operands)
    s_ref[...] = jnp.dot(
        x_ref[...], w_ref[...], preferred_element_type=jnp.float32
    ).astype(s_ref.dtype)


def _aggregate_kernel(adj_ref, s_ref, b_ref, o_ref):
    # out tile (i), accumulated directly into the VMEM-resident output block
    # over reduction tiles (k): o += A[i,k] @ S[k]; bias added once at the end.
    k = pl.program_id(1)

    @pl.when(k == 0)
    def _():
        o_ref[...] = jnp.zeros_like(o_ref)

    o_ref[...] += jnp.dot(
        adj_ref[...], s_ref[...], preferred_element_type=jnp.float32
    )

    @pl.when(k == pl.num_programs(1) - 1)
    def _():
        o_ref[...] += b_ref[...]


def prepare_adjacency(adj, *, block_m=1024, block_k=2048):
    """Pad + cast the dense adjacency to bf16 once; reuse it across layers/steps."""
    n = adj.shape[0]
    _, _, n_p = _choose_tiles(n, block_m, block_k)
    return jnp.zeros((n_p, n_p), jnp.bfloat16).at[:n, :n].set(
        adj.astype(jnp.bfloat16))


def _graph_convolution(x, adj, weight, bias=None, *, block_m=1024, block_k=2048):
    """Pallas GCN layer forward: adj @ (x @ weight) + bias."""
    n, f_in = x.shape
    f_out = weight.shape[1]
    assert weight.shape[0] == f_in

    tile_m, tile_k, n_p = _choose_tiles(n, block_m, block_k)
    f_in_p = _round_up(f_in, 128)
    f_out_p = _round_up(f_out, 128)

    if bias is None:
        bias = jnp.zeros((f_out,), jnp.float32)

    # Accept a pre-prepared (padded, bf16) adjacency so the pad/cast pre-pass
    # is paid once (via prepare_adjacency), not on every call.
    if adj.shape == (n_p, n_p) and adj.dtype == jnp.bfloat16:
        adj_p = adj
    else:
        assert adj.shape == (n, n)
        adj_p = jnp.zeros((n_p, n_p), jnp.bfloat16).at[:n, :n].set(
            adj.astype(jnp.bfloat16))

    x_p = jnp.zeros((n_p, f_in_p), jnp.bfloat16).at[:n, :f_in].set(
        x.astype(jnp.bfloat16))
    w_p = jnp.zeros((f_in_p, f_out_p), jnp.bfloat16).at[:f_in, :f_out].set(
        weight.astype(jnp.bfloat16))
    b_p = jnp.zeros((1, f_out_p), jnp.float32).at[0, :f_out].set(
        bias.astype(jnp.float32))

    # ---- Stage 1: support = X @ W (cheap, computed once, tiled over rows) ----
    # TODO(synk): add a K-tiling axis here if f_in can reach several thousand
    #             (a single (tile_m, f_in_p) X block must fit scoped VMEM).
    vmem1 = 2 * (tile_m * f_in_p * 2 + f_in_p * f_out_p * 2 + tile_m * f_out_p * 2)
    support = pl.pallas_call(
        _support_kernel,
        out_shape=jax.ShapeDtypeStruct((n_p, f_out_p), jnp.bfloat16),
        grid_spec=pltpu.PrefetchScalarGridSpec(
            num_scalar_prefetch=0,
            grid=(n_p // tile_m,),
            in_specs=[
                pl.BlockSpec((tile_m, f_in_p), lambda i: (i, 0)),      # x
                pl.BlockSpec((f_in_p, f_out_p), lambda i: (0, 0)),     # weight
            ],
            out_specs=pl.BlockSpec((tile_m, f_out_p), lambda i: (i, 0)),
        ),
        compiler_params=pltpu.CompilerParams(
            dimension_semantics=("parallel",),
            vmem_limit_bytes=int(min(max(2 * vmem1, 32 << 20), 64 << 20))),
        cost_estimate=pl.CostEstimate(
            flops=2 * n_p * f_in_p * f_out_p,
            transcendentals=0,
            bytes_accessed=2 * (n_p * f_in_p + f_in_p * f_out_p
                                + n_p * f_out_p)),
    )(x_p, w_p)

    # ---- Stage 2: out = adj @ support + bias (HBM-bound on the adj stream) ----
    num_row_tiles = n_p // tile_m
    num_red_tiles = n_p // tile_k
    vmem2 = 2 * (tile_m * tile_k * 2          # adj block (bf16), double-buffered
                 + tile_k * f_out_p * 2       # support block (bf16)
                 + tile_m * f_out_p * 4       # output block (f32 accumulator)
                 + f_out_p * 4)               # bias
    out_p = pl.pallas_call(
        _aggregate_kernel,
        out_shape=jax.ShapeDtypeStruct((n_p, f_out_p), jnp.float32),
        grid_spec=pltpu.PrefetchScalarGridSpec(
            num_scalar_prefetch=0,
            grid=(num_row_tiles, num_red_tiles),
            in_specs=[
                pl.BlockSpec((tile_m, tile_k), lambda i, k: (i, k)),     # adj
                pl.BlockSpec((tile_k, f_out_p), lambda i, k: (k, 0)),    # support
                pl.BlockSpec((1, f_out_p), lambda i, k: (0, 0)),         # bias
            ],
            out_specs=pl.BlockSpec((tile_m, f_out_p), lambda i, k: (i, 0)),
        ),
        compiler_params=pltpu.CompilerParams(
            dimension_semantics=("parallel", "arbitrary"),
            vmem_limit_bytes=int(min(max(2 * vmem2, 32 << 20), 64 << 20))),
        cost_estimate=pl.CostEstimate(
            flops=2 * n_p * n_p * f_out_p,
            transcendentals=0,
            bytes_accessed=(2 * n_p * n_p                          # adj
                            + 2 * n_p * f_out_p * num_row_tiles    # support re-reads
                            + 4 * (n_p * f_out_p + f_out_p))),     # out + bias
    )(adj_p, support, b_p)

    # Strip padding.
    return out_p[:n, :f_out]


# Jitted wrapper: pad/cast of unprepared inputs fuses with the pallas_calls.
graph_convolution = jax.jit(_graph_convolution, static_argnames=("block_m", "block_k"))


def init_gcn_params(key, in_features, out_features, bias=True):
    """Deterministic re-implementation of GraphConvolution.reset_parameters."""
    stdv = 1.0 / math.sqrt(out_features)
    kw, kb = jax.random.split(key)
    weight = jax.random.uniform(
        kw, (in_features, out_features), dtype=jnp.float32,
        minval=-stdv, maxval=stdv)
    b = (jax.random.uniform(
        kb, (out_features,), dtype=jnp.float32, minval=-stdv, maxval=stdv)
        if bias else None)
    return weight, b


if __name__ == "__main__":
    key = jax.random.PRNGKey(0)
    k_x, k_adj, k_param = jax.random.split(key, 3)

    # Small GCN problem with non-multiple-of-128 dims to exercise padding; small
    # blocks so the tiled grid has multiple row and reduction tiles.
    N, F_IN, F_OUT = 384, 96, 48
    BLOCK_M, BLOCK_K = 128, 256

    x = jax.random.normal(k_x, (N, F_IN), dtype=jnp.float32)

    # Row-normalized dense adjacency (self-loops), typical GCN preprocessing.
    a_raw = (jax.random.uniform(k_adj, (N, N)) < 0.05).astype(jnp.float32)
    a_raw = a_raw + jnp.eye(N, dtype=jnp.float32)
    adj = a_raw / jnp.sum(a_raw, axis=1, keepdims=True)

    weight, bias = init_gcn_params(k_param, F_IN, F_OUT, bias=True)

    # Path 1: raw adjacency (pad/cast fused into the jitted wrapper).
    out = graph_convolution(x, adj, weight, bias, block_m=BLOCK_M, block_k=BLOCK_K)
    out = jax.block_until_ready(out)
    assert out.shape == (N, F_OUT)

    # Path 2: adjacency padded/cast once with prepare_adjacency and reused.
    adj_prep = prepare_adjacency(adj, block_m=BLOCK_M, block_k=BLOCK_K)
    out_cached = jax.block_until_ready(
        graph_convolution(x, adj_prep, weight, bias,
                          block_m=BLOCK_M, block_k=BLOCK_K))
    assert jnp.allclose(out, out_cached, atol=1e-6, rtol=1e-6), \
        "cached-adjacency path mismatch"

    # Path 3: default (large) tiles, clamped down by the small graph.
    out_default = jax.block_until_ready(graph_convolution(x, adj, weight, bias))
    assert jnp.allclose(out, out_default, atol=2e-3, rtol=2e-3), \
        "default-tile path mismatch"

    # Tight check against a reference using the same bf16 operand rounding.
    xb = x.astype(jnp.bfloat16).astype(jnp.float32)
    wb = weight.astype(jnp.bfloat16).astype(jnp.float32)
    ab = adj.astype(jnp.bfloat16).astype(jnp.float32)
    support_ref = (xb @ wb).astype(jnp.bfloat16).astype(jnp.float32)
    ref_bf16 = ab @ support_ref + bias
    assert jnp.allclose(out, ref_bf16, atol=2e-3, rtol=2e-3), \
        "mismatch vs bf16-rounded reference"

    # Loose sanity check against the full-f32 reference.
    ref_f32 = adj @ (x @ weight) + bias
    assert jnp.allclose(out, ref_f32, atol=5e-2, rtol=5e-2), \
        "mismatch vs f32 reference beyond bf16 tolerance"

    print("KERNEL_OK")
</pallas_src>

<mosaic_0001>
module attributes {stable_mosaic.version = 11 : i64} {
  func.func @_support_kernel(%arg0: i32, %arg1: memref<128x128xbf16, #tpu.memory_space<vmem>>, %arg2: memref<128x128xbf16, #tpu.memory_space<vmem>>, %arg3: memref<128x128xbf16, #tpu.memory_space<vmem>>) attributes {dimension_semantics = [#tpu.dimension_semantics<parallel>], iteration_bounds = array<i64: 4>, scalar_prefetch = 0 : i64, scratch_operands = 0 : i64, tpu.core_type = #tpu.core_type<tc>, window_params = [{transform_indices = @transform_0, window_bounds = array<i64: 128, 128>}, {pipeline_mode = #tpu.pipeline_mode<synchronous>, transform_indices = @transform_1, window_bounds = array<i64: 128, 128>}, {transform_indices = @transform_2, window_bounds = array<i64: 128, 128>}]} {
    %c0 = arith.constant 0 : index
    %c0_0 = arith.constant 0 : index
    %0 = vector.load %arg1[%c0, %c0_0] : memref<128x128xbf16, #tpu.memory_space<vmem>>, vector<128x128xbf16>
    %c0_1 = arith.constant 0 : index
    %c0_2 = arith.constant 0 : index
    %1 = vector.load %arg2[%c0_1, %c0_2] : memref<128x128xbf16, #tpu.memory_space<vmem>>, vector<128x128xbf16>
    %cst = arith.constant dense<0.000000e+00> : vector<128x128xf32>
    %2 = tpu.matmul %0, %1, %cst {dimension_numbers = #tpu.dot_dimension_numbers<[1], [0], [0], [1], [0, 0, 1, 1], [], []>} : vector<128x128xbf16>, vector<128x128xbf16>, vector<128x128xf32> -> vector<128x128xf32>
    %3 = arith.truncf %2 : vector<128x128xf32> to vector<128x128xbf16>
    %c0_3 = arith.constant 0 : index
    %c0_4 = arith.constant 0 : index
    %4 = vector.load %arg3[%c0_3, %c0_4] : memref<128x128xbf16, #tpu.memory_space<vmem>>, vector<128x128xbf16>
    tpu.vector_store %arg3[%c0_3, %c0_4], %3 {strides = array<i32>} : memref<128x128xbf16, #tpu.memory_space<vmem>>, vector<128x128xbf16>,
    return
  }
  func.func @transform_0(%arg0: i32) -> (i32, i32) {
    %c0_i32 = arith.constant 0 : i32
    %c0_i32_0 = arith.constant 0 : i32
    return %arg0, %c0_i32 : i32, i32
  }
  func.func @transform_1(%arg0: i32) -> (i32, i32) {
    %c0_i32 = arith.constant 0 : i32
    %c0_i32_0 = arith.constant 0 : i32
    %c0_i32_1 = arith.constant 0 : i32
    return %c0_i32, %c0_i32_0 : i32, i32
  }
  func.func @transform_2(%arg0: i32) -> (i32, i32) {
    %c0_i32 = arith.constant 0 : i32
    %c0_i32_0 = arith.constant 0 : i32
    return %arg0, %c0_i32 : i32, i32
  }
}

module attributes {stable_mosaic.version = 11 : i64} {
  func.func @_aggregate_kernel(%arg0: i32, %arg1: i32, %arg2: memref<128x256xbf16, #tpu.memory_space<vmem>>, %arg3: memref<256x128xbf16, #tpu.memory_space<vmem>>, %arg4: memref<1x128xf32, #tpu.memory_space<vmem>>, %arg5: memref<128x128xf32, #tpu.memory_space<vmem>>) attributes {dimension_semantics = [#tpu.dimension_semantics<parallel>, #tpu.dimension_semantics<arbitrary>], iteration_bounds = array<i64: 4, 2>, scalar_prefetch = 0 : i64, scratch_operands = 0 : i64, tpu.core_type = #tpu.core_type<tc>, window_params = [{transform_indices = @transform_0, window_bounds = array<i64: 128, 256>}, {transform_indices = @transform_1, window_bounds = array<i64: 256, 128>}, {pipeline_mode = #tpu.pipeline_mode<synchronous>, transform_indices = @transform_2, window_bounds = array<i64: 1, 128>}, {transform_indices = @transform_3, window_bounds = array<i64: 128, 128>}]} {
    %c0_i32 = arith.constant 0 : i32
    %0 = arith.cmpi eq, %arg1, %c0_i32 : i32
    %1 = arith.extui %0 : i1 to i32
    %c0_i32_0 = arith.constant 0 : i32
    %2 = arith.cmpi ne, %1, %c0_i32_0 : i32
    scf.if %2 {
      %cst_9 = arith.constant 0.000000e+00 : f32
      %12 = vector.broadcast %cst_9 : f32 to vector<128x128xf32>
      %c0_10 = arith.constant 0 : index
      %c0_11 = arith.constant 0 : index
      %13 = vector.load %arg5[%c0_10, %c0_11] : memref<128x128xf32, #tpu.memory_space<vmem>>, vector<128x128xf32>
      tpu.vector_store %arg5[%c0_10, %c0_11], %12 {strides = array<i32>} : memref<128x128xf32, #tpu.memory_space<vmem>>, vector<128x128xf32>,
    } else {
    }
    %c0 = arith.constant 0 : index
    %c0_1 = arith.constant 0 : index
    %3 = vector.load %arg5[%c0, %c0_1] : memref<128x128xf32, #tpu.memory_space<vmem>>, vector<128x128xf32>
    %c0_2 = arith.constant 0 : index
    %c0_3 = arith.constant 0 : index
    %4 = vector.load %arg2[%c0_2, %c0_3] : memref<128x256xbf16, #tpu.memory_space<vmem>>, vector<128x256xbf16>
    %c0_4 = arith.constant 0 : index
    %c0_5 = arith.constant 0 : index
    %5 = vector.load %arg3[%c0_4, %c0_5] : memref<256x128xbf16, #tpu.memory_space<vmem>>, vector<256x128xbf16>
    %cst = arith.constant dense<0.000000e+00> : vector<128x128xf32>
    %6 = tpu.matmul %4, %5, %cst {dimension_numbers = #tpu.dot_dimension_numbers<[1], [0], [0], [1], [0, 0, 1, 1], [], []>} : vector<128x256xbf16>, vector<256x128xbf16>, vector<128x128xf32> -> vector<128x128xf32>
    %7 = arith.addf %3, %6 : vector<128x128xf32>
    %c0_6 = arith.constant 0 : index
    %c0_7 = arith.constant 0 : index
    %8 = vector.load %arg5[%c0_6, %c0_7] : memref<128x128xf32, #tpu.memory_space<vmem>>, vector<128x128xf32>
    tpu.vector_store %arg5[%c0_6, %c0_7], %7 {strides = array<i32>} : memref<128x128xf32, #tpu.memory_space<vmem>>, vector<128x128xf32>,
    %c1_i32 = arith.constant 1 : i32
    %9 = arith.cmpi eq, %arg1, %c1_i32 : i32
    %10 = arith.extui %9 : i1 to i32
    %c0_i32_8 = arith.constant 0 : i32
    %11 = arith.cmpi ne, %10, %c0_i32_8 : i32
    scf.if %11 {
      %c0_9 = arith.constant 0 : index
      %c0_10 = arith.constant 0 : index
      %12 = vector.load %arg5[%c0_9, %c0_10] : memref<128x128xf32, #tpu.memory_space<vmem>>, vector<128x128xf32>
      %c0_11 = arith.constant 0 : index
      %c0_12 = arith.constant 0 : index
      %13 = vector.load %arg4[%c0_11, %c0_12] : memref<1x128xf32, #tpu.memory_space<vmem>>, vector<1x128xf32>
      %14 = vector.broadcast %13 : vector<1x128xf32> to vector<128x128xf32>
      %15 = arith.addf %12, %14 : vector<128x128xf32>
      %c0_13 = arith.constant 0 : index
      %c0_14 = arith.constant 0 : index
      %16 = vector.load %arg5[%c0_13, %c0_14] : memref<128x128xf32, #tpu.memory_space<vmem>>, vector<128x128xf32>
      tpu.vector_store %arg5[%c0_13, %c0_14], %15 {strides = array<i32>} : memref<128x128xf32, #tpu.memory_space<vmem>>, vector<128x128xf32>,
    } else {
    }
    return
  }
  func.func @transform_0(%arg0: i32, %arg1: i32) -> (i32, i32) {
    %c0_i32 = arith.constant 0 : i32
    return %arg0, %arg1 : i32, i32
  }
  func.func @transform_1(%arg0: i32, %arg1: i32) -> (i32, i32) {
    %c0_i32 = arith.constant 0 : i32
    %c0_i32_0 = arith.constant 0 : i32
    return %arg1, %c0_i32 : i32, i32
  }
  func.func @transform_2(%arg0: i32, %arg1: i32) -> (i32, i32) {
    %c0_i32 = arith.constant 0 : i32
    %c0_i32_0 = arith.constant 0 : i32
    %c0_i32_1 = arith.constant 0 : i32
    return %c0_i32, %c0_i32_0 : i32, i32
  }
  func.func @transform_3(%arg0: i32, %arg1: i32) -> (i32, i32) {
    %c0_i32 = arith.constant 0 : i32
    %c0_i32_0 = arith.constant 0 : i32
    return %arg0, %c0_i32 : i32, i32
  }
}

</mosaic_0001>

<llo_original>
// kernel: _graph_convolution.2
$region0: #{_graph_convolution.2}
  #allocation0 [shape = 'u32[]', space=smem, size = 0x4, offset = 0x4, fixed_abs, tag = 'smem constant byte address 0x4 - core index']
  #allocation1 [shape = 'u32[72,128]{1,0:T(1,128)}', space=vmem, size = 0x9000, scoped, tag = 'internal scratch']
  %s0 = inlined_call_operand.vmem [shape: bf16[512,128], index: 0, kind: input, shape index: {}]
  %s1 = inlined_call_operand.vmem [shape: bf16[128,128], index: 1, kind: input, shape index: {}]
  %s2 = inlined_call_operand.vmem [shape: bf16[512,128], index: 2, kind: output, shape index: {}]
  %s3 = sld [smem:[#allocation0]]
  $region41: #{_graph_convolution.2} parent=0
    _
  %s5 = ssub.s32 1, %s3
  %s6 = scalar_select 0, %s5, %s3
  loop: start=0, step=1, limit=6
  $region2: #{_graph_convolution.2} parent=0 // loop_pre_header
    _
  $region3: #{_graph_convolution.2} parent=0 // loop_header
    %s8 = sphi 0, %s12
    %p9 = scmp.ge.s32.totalorder %s8, 6
    %s18 = sphi 0, %s20
    %s21 = sphi 0, %s18
    %s22 = sphi 0, %s21
    %s38 = sphi 0, %s22
    %s42 = sphi 0, %s42
    %s44 = sphi 0, %s42
    %s45 = sphi 0, %s44
    %s59 = sphi 0, %s45
    %s65 = sphi 0, %s67
    %s68 = sphi 0, %s65
    %s69 = sphi 0, %s68
    %s85 = sphi 0, %s69
  $region4: #{_graph_convolution.2} parent=0 // loop_header_branch
    %11 = sbr.rel (%p9) target = $region8
  $region5: #{_graph_convolution.2} parent=0 // loop_body
    %s13 = ssub.s32 %s8, 1
    %s14 = ssub.s32 %s8, 2
    %s15 = sadd.s32 %s8, 1
    %s16 = ssub.s32 %s8, %s15
    %p17 = scmp.eq.s32.totalorder %s16, 0
    %s19 = sadd.s32 %s18, 1
    %s20 = scalar_select %p17, %s18, %s19
    %p23 = pneg %p17
    %p24 = scmp.eq.s32.totalorder %s8, 3
    %p25 = por %p23, %p24
    %p26 = scmp.ne.s32.totalorder %s18, %s21
    %p27 = scmp.eq.s32.totalorder %s8, 0
    %p28 = por %p26, %p27
    %p29 = scmp.ne.s32.totalorder %s18, %s21
    %p30 = scmp.eq.s32.totalorder %s13, 3
    %p31 = por %p29, %p30
    %p32 = scmp.ne.s32.totalorder %s21, %s22
    %p33 = scmp.eq.s32.totalorder %s13, 0
    %p34 = por %p32, %p33
    %p35 = scmp.ne.s32.totalorder %s21, %s22
    %p36 = scmp.eq.s32.totalorder %s14, 3
    %p37 = por %p35, %p36
    %p39 = scmp.ne.s32.totalorder %s22, %s38
    %p40 = scmp.eq.s32.totalorder %s14, 0
    %p41 = por %p39, %p40
    %s43 = sadd.s32 %s42, 1
    %p46 = scmp.eq.s32.totalorder %s8, 3
    %p47 = scmp.ne.s32.totalorder %s42, %s44
    %p48 = scmp.eq.s32.totalorder %s8, 0
    %p49 = por %p47, %p48
    %p50 = scmp.ne.s32.totalorder %s42, %s44
    %p51 = scmp.eq.s32.totalorder %s13, 3
    %p52 = por %p50, %p51
    %p53 = scmp.ne.s32.totalorder %s44, %s45
    %p54 = scmp.eq.s32.totalorder %s13, 0
    %p55 = por %p53, %p54
    %p56 = scmp.ne.s32.totalorder %s44, %s45
    %p57 = scmp.eq.s32.totalorder %s14, 3
    %p58 = por %p56, %p57
    %p60 = scmp.ne.s32.totalorder %s45, %s59
    %p61 = scmp.eq.s32.totalorder %s14, 0
    %p62 = por %p60, %p61
    %s63 = ssub.s32 %s8, %s15
    %p64 = scmp.eq.s32.totalorder %s63, 0
    %s66 = sadd.s32 %s65, 1
    %s67 = scalar_select %p64, %s65, %s66
    %p70 = pneg %p64
    %p71 = scmp.eq.s32.totalorder %s8, 3
    %p72 = por %p70, %p71
    %p73 = scmp.ne.s32.totalorder %s65, %s68
    %p74 = scmp.eq.s32.totalorder %s8, 0
    %p75 = por %p73, %p74
    %p76 = scmp.ne.s32.totalorder %s65, %s68
    %p77 = scmp.eq.s32.totalorder %s13, 3
    %p78 = por %p76, %p77
    %p79 = scmp.ne.s32.totalorder %s68, %s69
    %p80 = scmp.eq.s32.totalorder %s13, 0
    %p81 = por %p79, %p80
    %p82 = scmp.ne.s32.totalorder %s68, %s69
    %p83 = scmp.eq.s32.totalorder %s14, 3
    %p84 = por %p82, %p83
    %p86 = scmp.ne.s32.totalorder %s69, %s85
    %p87 = scmp.eq.s32.totalorder %s14, 0
    %p88 = por %p86, %p87
    %p89 = scmp.le.s32.totalorder 1, %s8
    %p90 = scmp.lt.s32.totalorder %s8, 5
    %p91 = pnand %p89, %p90
    %p92 = pneg %p91
    // Predicated region
    $region9: #{_graph_convolution.2} parent=5 // pred_check
      _
    $region10: #{_graph_convolution.2} parent=5 // pred_check_branch
      %94 = sbr.rel (%p91) target = $region12
    $region11: #{_graph_convolution.2} parent=5 // pred_region
      %s95 = ssub.s32 %s8, 1
      // Predicated region
      $region13: #{_graph_convolution.2} parent=11 // pred_check
        %p96 = pneg %p55
      $region14: #{_graph_convolution.2} parent=11 // pred_check_branch
        %98 = sbr.rel (%p96) target = $region16
      $region15: #{_graph_convolution.2} parent=11 // pred_region
        _
      $region16: #{_graph_convolution.2} parent=11 // pred_fallthru
        _
    $region12: #{_graph_convolution.2} parent=5 // pred_fallthru
      _
    %p99 = scmp.lt.s32.totalorder %s8, 4
    // Predicated region
    $region17: #{_graph_convolution.2} parent=5 // pred_check
      %p100 = pneg %p99
    $region18: #{_graph_convolution.2} parent=5 // pred_check_branch
      %102 = sbr.rel (%p100) target = $region20
    $region19: #{_graph_convolution.2} parent=5 // pred_region
      // Predicated region
      $region21: #{_graph_convolution.2} parent=19 // pred_check
        %p103 = pneg %p28
      $region22: #{_graph_convolution.2} parent=19 // pred_check_branch
        %105 = sbr.rel (%p103) target = $region24
      $region23: #{_graph_convolution.2} parent=19 // pred_region
        %s106 = smul.u32 16, %s8
        %p107 = scmp.lt.s32.totalorder %s106, 63
        %s108 = scalar_select %p107, %s106, 63
        %s109 = smul.addr %s108, 4
        %s110 = scalar_lea.vmem %s0, %s109
        %s111 = smul.u32 16, %s8
      $region24: #{_graph_convolution.2} parent=19 // pred_fallthru
        _
    $region20: #{_graph_convolution.2} parent=5 // pred_fallthru
      _
    %p112 = scmp.le.s32.totalorder 1, %s8
    %p113 = scmp.lt.s32.totalorder %s8, 5
    %p114 = pnand %p112, %p113
    %p115 = pneg %p114
    // Predicated region
    $region25: #{_graph_convolution.2} parent=5 // pred_check
      _
    $region26: #{_graph_convolution.2} parent=5 // pred_check_branch
      %117 = sbr.rel (%p114) target = $region28
    $region27: #{_graph_convolution.2} parent=5 // pred_region
      %s118 = ssub.s32 %s8, 1
      %s119 = smul.u32 16, %s13
      %p120 = scmp.lt.s32.totalorder %s119, 63
      %s121 = scalar_select %p120, %s119, 63
      %s122 = smul.addr %s121, 4
      %s123 = scalar_lea.vmem %s0, %s122
      %p124 = pneg %p34
      %p125 = pneg %p31
      %p126 = pneg %p55
      %p127 = pneg %p52
      %p128 = pneg %p81
      %p129 = pneg %p78
      %s130 = smul.u32 16, %s13
      %p131 = scmp.lt.s32.totalorder %s130, 63
      %s132 = scalar_select %p131, %s130, 63
      %s133 = smul.addr %s132, 4
      %s134 = scalar_lea.vmem %s2, %s133
      %s135 = smul.u32 16, %s13
      %p136 = scmp.lt.s32.totalorder %s135, 63
      %s137 = scalar_select %p136, %s135, 63
      %s138 = smul.addr %s137, 4
      %s139 = scalar_lea.vmem %s0, %s138
      %s140 = smul.u32 16, %s13
      %s141 = smul.u32 16, %s13
      %p142 = scmp.lt.s32.totalorder %s141, 63
      %s143 = scalar_select %p142, %s141, 63
      %s144 = smul.addr %s143, 4
      %s145 = scalar_lea.vmem %s2, %s144
      %s146 = smul.u32 16, %s13
      %v147 = vld [vmem:[%s139] sm:$0xf]
      %v148 = vld [vmem:[%s139 + $0x4] sm:$0xf]
      %v149 = vld [vmem:[%s139 + $0x8] sm:$0xf]
      %v150 = vld [vmem:[%s139 + $0xc] sm:$0xf]
      %v151 = vld [vmem:[%s139 + $0x10] sm:$0xf]
      %v152 = vld [vmem:[%s139 + $0x14] sm:$0xf]
      %v153 = vld [vmem:[%s139 + $0x18] sm:$0xf]
      %v154 = vld [vmem:[%s139 + $0x1c] sm:$0xf]
      %v155 = vld [vmem:[%s139 + $0x20] sm:$0xf]
      %v156 = vld [vmem:[%s139 + $0x24] sm:$0xf]
      %v157 = vld [vmem:[%s139 + $0x28] sm:$0xf]
      %v158 = vld [vmem:[%s139 + $0x2c] sm:$0xf]
      %v159 = vld [vmem:[%s139 + $0x30] sm:$0xf]
      %v160 = vld [vmem:[%s139 + $0x34] sm:$0xf]
      %v161 = vld [vmem:[%s139 + $0x38] sm:$0xf]
      %v162 = vld [vmem:[%s139 + $0x3c] sm:$0xf]
      %v163 = vld [vmem:[%s1] sm:$0xf]
      %v164 = vld [vmem:[%s1 + $0x4] sm:$0xf]
      %v165 = vld [vmem:[%s1 + $0x8] sm:$0xf]
      %v166 = vld [vmem:[%s1 + $0xc] sm:$0xf]
      %v167 = vld [vmem:[%s1 + $0x10] sm:$0xf]
      %v168 = vld [vmem:[%s1 + $0x14] sm:$0xf]
      %v169 = vld [vmem:[%s1 + $0x18] sm:$0xf]
      %v170 = vld [vmem:[%s1 + $0x1c] sm:$0xf]
      %v171 = vld [vmem:[%s1 + $0x20] sm:$0xf]
      %v172 = vld [vmem:[%s1 + $0x24] sm:$0xf]
      %v173 = vld [vmem:[%s1 + $0x28] sm:$0xf]
      %v174 = vld [vmem:[%s1 + $0x2c] sm:$0xf]
      %v175 = vld [vmem:[%s1 + $0x30] sm:$0xf]
      %v176 = vld [vmem:[%s1 + $0x34] sm:$0xf]
      %v177 = vld [vmem:[%s1 + $0x38] sm:$0xf]
      %v178 = vld [vmem:[%s1 + $0x3c] sm:$0xf]
      %v195 = vunpack.c.l.b16 %v147
      %v196 = vunpack.c.l.b16 %v148
      %v197 = vunpack.c.l.b16 %v149
      %v198 = vunpack.c.l.b16 %v150
      %v199 = vunpack.c.l.b16 %v151
      %v200 = vunpack.c.l.b16 %v152
      %v201 = vunpack.c.l.b16 %v153
      %v202 = vunpack.c.l.b16 %v154
      %v203 = vunpack.c.l.b16 %v155
      %v204 = vunpack.c.l.b16 %v156
      %v205 = vunpack.c.l.b16 %v157
      %v206 = vunpack.c.l.b16 %v158
      %v207 = vunpack.c.l.b16 %v159
      %v208 = vunpack.c.l.b16 %v160
      %v209 = vunpack.c.l.b16 %v161
      %v210 = vunpack.c.l.b16 %v162
      %v211 = vpack.c.b16 %v196, %v195
      %v212 = vpack.c.b16 %v198, %v197
      %v213 = vpack.c.b16 %v200, %v199
      %v214 = vpack.c.b16 %v202, %v201
      %v215 = vpack.c.b16 %v204, %v203
      %v216 = vpack.c.b16 %v206, %v205
      %v217 = vpack.c.b16 %v208, %v207
      %v218 = vpack.c.b16 %v210, %v209
      %v243 = vunpack.c.l.b16 %v163
      %v244 = vunpack.c.l.b16 %v164
      %v245 = vunpack.c.l.b16 %v165
      %v246 = vunpack.c.l.b16 %v166
      %v247 = vunpack.c.l.b16 %v167
      %v248 = vunpack.c.l.b16 %v168
      %v249 = vunpack.c.l.b16 %v169
      %v250 = vunpack.c.l.b16 %v170
      %v251 = vunpack.c.l.b16 %v171
      %v252 = vunpack.c.l.b16 %v172
      %v253 = vunpack.c.l.b16 %v173
      %v254 = vunpack.c.l.b16 %v174
      %v255 = vunpack.c.l.b16 %v175
      %v256 = vunpack.c.l.b16 %v176
      %v257 = vunpack.c.l.b16 %v177
      %v258 = vunpack.c.l.b16 %v178
      %v259 = vpack.c.b16 %v244, %v243
      %v260 = vpack.c.b16 %v246, %v245
      %v261 = vpack.c.b16 %v248, %v247
      %v262 = vpack.c.b16 %v250, %v249
      %v263 = vpack.c.b16 %v252, %v251
      %v264 = vpack.c.b16 %v254, %v253
      %v265 = vpack.c.b16 %v256, %v255
      %v266 = vpack.c.b16 %v258, %v257
      %275 = vmatpush.bf16.msra.mxu0 %v266
      %276 = vmatpush.bf16.msra.mxu0 %v265
      %277 = vmatpush.bf16.msra.mxu0 %v264
      %278 = vmatpush.bf16.msra.mxu0 %v263
      %279 = vmatpush.bf16.msra.mxu0 %v262
      %280 = vmatpush.bf16.msra.mxu0 %v261
      %281 = vmatpush.bf16.msra.mxu0 %v260
      %282 = vmatpush.bf16.msra.mxu0 %v259
      %283 = vmatmul.bf16.gmra.mxu0 %v211
      %v284 = vpop.f32.mrf.mxu0
      %v285 = vadd.f32 0.0, %v284
      %v286 = vpop.f32.mrf.mxu0
      %v287 = vadd.f32 0.0, %v286
      %288 = vmatmul.bf16.gmra.mxu0 %v212
      %v289 = vpop.f32.mrf.mxu0
      %v290 = vadd.f32 0.0, %v289
      %v291 = vpop.f32.mrf.mxu0
      %v292 = vadd.f32 0.0, %v291
      %293 = vmatmul.bf16.gmra.mxu0 %v213
      %v294 = vpop.f32.mrf.mxu0
      %v295 = vadd.f32 0.0, %v294
      %v296 = vpop.f32.mrf.mxu0
      %v297 = vadd.f32 0.0, %v296
      %298 = vmatmul.bf16.gmra.mxu0 %v214
      %v299 = vpop.f32.mrf.mxu0
      %v300 = vadd.f32 0.0, %v299
      %v301 = vpop.f32.mrf.mxu0
      %v302 = vadd.f32 0.0, %v301
      %303 = vmatmul.bf16.gmra.mxu0 %v215
      %v304 = vpop.f32.mrf.mxu0
      %v305 = vadd.f32 0.0, %v304
      %v306 = vpop.f32.mrf.mxu0
      %v307 = vadd.f32 0.0, %v306
      %308 = vmatmul.bf16.gmra.mxu0 %v216
      %v309 = vpop.f32.mrf.mxu0
      %v310 = vadd.f32 0.0, %v309
      %v311 = vpop.f32.mrf.mxu0
      %v312 = vadd.f32 0.0, %v311
      %313 = vmatmul.bf16.gmra.mxu0 %v217
      %v314 = vpop.f32.mrf.mxu0
      %v315 = vadd.f32 0.0, %v314
      %v316 = vpop.f32.mrf.mxu0
      %v317 = vadd.f32 0.0, %v316
      %318 = vmatmul.bf16.gmra.mxu0 %v218
      %v319 = vpop.f32.mrf.mxu0
      %v320 = vadd.f32 0.0, %v319
      %v321 = vpop.f32.mrf.mxu0
      %v322 = vadd.f32 0.0, %v321
      %323 = vdwg.mxu0
      %v324 = vpack.c.bf16 %v285, %v285
      %v325 = vpack.c.bf16 %v287, %v287
      %v326 = vpack.c.bf16 %v290, %v290
      %v327 = vpack.c.bf16 %v292, %v292
      %v328 = vpack.c.bf16 %v295, %v295
      %v329 = vpack.c.bf16 %v297, %v297
      %v330 = vpack.c.bf16 %v300, %v300
      %v331 = vpack.c.bf16 %v302, %v302
      %v332 = vpack.c.bf16 %v305, %v305
      %v333 = vpack.c.bf16 %v307, %v307
      %v334 = vpack.c.bf16 %v310, %v310
      %v335 = vpack.c.bf16 %v312, %v312
      %v336 = vpack.c.bf16 %v315, %v315
      %v337 = vpack.c.bf16 %v317, %v317
      %v338 = vpack.c.bf16 %v320, %v320
      %v339 = vpack.c.bf16 %v322, %v322
      %340 = vst [vmem:[%s145] sm:$0xf] %v324
      %341 = vst [vmem:[%s145 + $0x4] sm:$0xf] %v325
      %342 = vst [vmem:[%s145 + $0x8] sm:$0xf] %v326
      %343 = vst [vmem:[%s145 + $0xc] sm:$0xf] %v327
      %344 = vst [vmem:[%s145 + $0x10] sm:$0xf] %v328
      %345 = vst [vmem:[%s145 + $0x14] sm:$0xf] %v329
      %346 = vst [vmem:[%s145 + $0x18] sm:$0xf] %v330
      %347 = vst [vmem:[%s145 + $0x1c] sm:$0xf] %v331
      %348 = vst [vmem:[%s145 + $0x20] sm:$0xf] %v332
      %349 = vst [vmem:[%s145 + $0x24] sm:$0xf] %v333
      %350 = vst [vmem:[%s145 + $0x28] sm:$0xf] %v334
      %351 = vst [vmem:[%s145 + $0x2c] sm:$0xf] %v335
      %352 = vst [vmem:[%s145 + $0x30] sm:$0xf] %v336
      %353 = vst [vmem:[%s145 + $0x34] sm:$0xf] %v337
      %354 = vst [vmem:[%s145 + $0x38] sm:$0xf] %v338
      %355 = vst [vmem:[%s145 + $0x3c] sm:$0xf] %v339
      %s356 = smul.u32 16, %s13
      %p357 = scmp.lt.s32.totalorder %s356, 63
      %s358 = scalar_select %p357, %s356, 63
      %s359 = smul.addr %s358, 4
      %s360 = scalar_lea.vmem %s2, %s359
      // Predicated region
      $region29: #{_graph_convolution.2} parent=27 // pred_check
        %p361 = pneg %p78
      $region30: #{_graph_convolution.2} parent=27 // pred_check_branch
        %363 = sbr.rel (%p361) target = $region32
      $region31: #{_graph_convolution.2} parent=27 // pred_region
        %s364 = smul.u32 16, %s13
      $region32: #{_graph_convolution.2} parent=27 // pred_fallthru
        _
    $region28: #{_graph_convolution.2} parent=5 // pred_fallthru
      _
    %p365 = scmp.le.s32.totalorder 2, %s8
    // Predicated region
    $region33: #{_graph_convolution.2} parent=5 // pred_check
      %p366 = pneg %p365
    $region34: #{_graph_convolution.2} parent=5 // pred_check_branch
      %368 = sbr.rel (%p366) target = $region36
    $region35: #{_graph_convolution.2} parent=5 // pred_region
      %s369 = ssub.s32 %s8, 2
      // Predicated region
      $region37: #{_graph_convolution.2} parent=35 // pred_check
        %p370 = pneg %p84
      $region38: #{_graph_convolution.2} parent=35 // pred_check_branch
        %372 = sbr.rel (%p370) target = $region40
      $region39: #{_graph_convolution.2} parent=35 // pred_region
        %s373 = smul.u32 16, %s14
        %p374 = scmp.lt.s32.totalorder %s373, 63
        %s375 = scalar_select %p374, %s373, 63
        %s376 = smul.addr %s375, 4
        %s377 = scalar_lea.vmem %s2, %s376
      $region40: #{_graph_convolution.2} parent=35 // pred_fallthru
        _
    $region36: #{_graph_convolution.2} parent=5 // pred_fallthru
      _
  $region6: #{_graph_convolution.2} parent=0 // loop_footer
    %s12 = sadd.s32 1, %s8
  $region7: #{_graph_convolution.2} parent=0 // loop_footer_branch
    %7 = sbr.rel target = $region3
  $region8: #{_graph_convolution.2} parent=0 // loop_exit
    _

// kernel: _graph_convolution.3
$region0: #{_graph_convolution.3}
  #allocation0 [shape = 'u32[]', space=smem, size = 0x4, offset = 0x4, fixed_abs, tag = 'smem constant byte address 0x4 - core index']
  #allocation1 [shape = 'u32[72,128]{1,0:T(1,128)}', space=vmem, size = 0x9000, scoped, tag = 'internal scratch']
  %s0 = inlined_call_operand.vmem [shape: bf16[512,512], index: 0, kind: input, shape index: {}]
  %s1 = inlined_call_operand.vmem [shape: bf16[512,128], index: 1, kind: input, shape index: {}]
  %s2 = inlined_call_operand.vmem [shape: f32[1,128], index: 2, kind: input, shape index: {}]
  %s3 = inlined_call_operand.vmem [shape: f32[512,128], index: 3, kind: output, shape index: {}]
  %s4 = sld [smem:[#allocation0]]
  $region91: #{_graph_convolution.3} parent=0
    _
  %s6 = ssub.s32 1, %s4
  %s7 = scalar_select 0, %s6, %s4
  $region1: #{_graph_convolution.3} parent=0
    #allocation2 [shape = 'u8[131072]{0}', space=vmem, size = 0x20000, scoped, tag = 'input window, operand 0']
    loop: start=0, step=1, limit=10
    $region2: #{_graph_convolution.3} parent=1 // loop_pre_header
      _
    $region3: #{_graph_convolution.3} parent=1 // loop_header
      %s9 = sphi 0, %s13
      %p10 = scmp.ge.s32.totalorder %s9, 10
      %s16 = sphi 0, %s28
      %s17 = sphi 0, %s24
      %s18 = sphi 0, %s16
      %s19 = sphi 0, %s17
      %s20 = sphi 0, %s18
      %s21 = sphi 0, %s19
      %s33 = sphi 0, %s35
      %s36 = sphi 0, %s33
      %s37 = sphi 0, %s36
      %s53 = sphi 0, %s37
      %s59 = sphi 0, %s61
      %s62 = sphi 0, %s59
      %s63 = sphi 0, %s62
      %s79 = sphi 0, %s63
      %s83 = sphi 0, %s83
      %s85 = sphi 0, %s83
      %s86 = sphi 0, %s85
      %s100 = sphi 0, %s86
      %s106 = sphi 0, %s108
      %s109 = sphi 0, %s106
      %s110 = sphi 0, %s109
      %s126 = sphi 0, %s110
    $region4: #{_graph_convolution.3} parent=1 // loop_header_branch
      %12 = sbr.rel (%p10) target = $region8
    $region5: #{_graph_convolution.3} parent=1 // loop_body
      %s14 = ssub.s32 %s9, 1
      %s15 = ssub.s32 %s9, 2
      %s22 = sadd.s32 1, %s17
      %p23 = scmp.ge.s32.totalorder %s22, 2
      %s24 = scalar_select %p23, 0, %s22
      %s25 = sadd.s32 1, %s16
      %s26 = scalar_select %p23, %s25, %s16
      %p27 = scmp.ge.s32.totalorder %s26, 4
      %s28 = scalar_select %p27, 0, %s26
      %s29 = ssub.s32 %s16, %s28
      %s30 = ssub.s32 %s17, %s24
      %s31 = sor.u32 %s29, %s30
      %p32 = scmp.eq.s32.totalorder %s31, 0
      %s34 = sadd.s32 %s33, 1
      %s35 = scalar_select %p32, %s33, %s34
      %p38 = pneg %p32
      %p39 = scmp.eq.s32.totalorder %s9, 7
      %p40 = por %p38, %p39
      %p41 = scmp.ne.s32.totalorder %s33, %s36
      %p42 = scmp.eq.s32.totalorder %s9, 0
      %p43 = por %p41, %p42
      %p44 = scmp.ne.s32.totalorder %s33, %s36
      %p45 = scmp.eq.s32.totalorder %s14, 7
      %p46 = por %p44, %p45
      %p47 = scmp.ne.s32.totalorder %s36, %s37
      %p48 = scmp.eq.s32.totalorder %s14, 0
      %p49 = por %p47, %p48
      %p50 = scmp.ne.s32.totalorder %s36, %s37
      %p51 = scmp.eq.s32.totalorder %s15, 7
      %p52 = por %p50, %p51
      %p54 = scmp.ne.s32.totalorder %s37, %s53
      %p55 = scmp.eq.s32.totalorder %s15, 0
      %p56 = por %p54, %p55
      %s57 = ssub.s32 %s17, %s24
      %p58 = scmp.eq.s32.totalorder %s57, 0
      %s60 = sadd.s32 %s59, 1
      %s61 = scalar_select %p58, %s59, %s60
      %p64 = pneg %p58
      %p65 = scmp.eq.s32.totalorder %s9, 7
      %p66 = por %p64, %p65
      %p67 = scmp.ne.s32.totalorder %s59, %s62
      %p68 = scmp.eq.s32.totalorder %s9, 0
      %p69 = por %p67, %p68
      %p70 = scmp.ne.s32.totalorder %s59, %s62
      %p71 = scmp.eq.s32.totalorder %s14, 7
      %p72 = por %p70, %p71
      %p73 = scmp.ne.s32.totalorder %s62, %s63
      %p74 = scmp.eq.s32.totalorder %s14, 0
      %p75 = por %p73, %p74
      %p76 = scmp.ne.s32.totalorder %s62, %s63
      %p77 = scmp.eq.s32.totalorder %s15, 7
      %p78 = por %p76, %p77
      %p80 = scmp.ne.s32.totalorder %s63, %s79
      %p81 = scmp.eq.s32.totalorder %s15, 0
      %p82 = por %p80, %p81
      %s84 = sadd.s32 %s83, 1
      %p87 = scmp.eq.s32.totalorder %s9, 7
      %p88 = scmp.ne.s32.totalorder %s83, %s85
      %p89 = scmp.eq.s32.totalorder %s9, 0
      %p90 = por %p88, %p89
      %p91 = scmp.ne.s32.totalorder %s83, %s85
      %p92 = scmp.eq.s32.totalorder %s14, 7
      %p93 = por %p91, %p92
      %p94 = scmp.ne.s32.totalorder %s85, %s86
      %p95 = scmp.eq.s32.totalorder %s14, 0
      %p96 = por %p94, %p95
      %p97 = scmp.ne.s32.totalorder %s85, %s86
      %p98 = scmp.eq.s32.totalorder %s15, 7
      %p99 = por %p97, %p98
      %p101 = scmp.ne.s32.totalorder %s86, %s100
      %p102 = scmp.eq.s32.totalorder %s15, 0
      %p103 = por %p101, %p102
      %s104 = ssub.s32 %s16, %s28
      %p105 = scmp.eq.s32.totalorder %s104, 0
      %s107 = sadd.s32 %s106, 1
      %s108 = scalar_select %p105, %s106, %s107
      %p111 = pneg %p105
      %p112 = scmp.eq.s32.totalorder %s9, 7
      %p113 = por %p111, %p112
      %p114 = scmp.ne.s32.totalorder %s106, %s109
      %p115 = scmp.eq.s32.totalorder %s9, 0
      %p116 = por %p114, %p115
      %p117 = scmp.ne.s32.totalorder %s106, %s109
      %p118 = scmp.eq.s32.totalorder %s14, 7
      %p119 = por %p117, %p118
      %p120 = scmp.ne.s32.totalorder %s109, %s110
      %p121 = scmp.eq.s32.totalorder %s14, 0
      %p122 = por %p120, %p121
      %p123 = scmp.ne.s32.totalorder %s109, %s110
      %p124 = scmp.eq.s32.totalorder %s15, 7
      %p125 = por %p123, %p124
      %p127 = scmp.ne.s32.totalorder %s110, %s126
      %p128 = scmp.eq.s32.totalorder %s15, 0
      %p129 = por %p127, %p128
      %p130 = scmp.le.s32.totalorder 1, %s9
      %p131 = scmp.lt.s32.totalorder %s9, 9
      %p132 = pnand %p130, %p131
      %p133 = pneg %p132
      // Predicated region
      $region9: #{_graph_convolution.3} parent=5 // pred_check
        _
      $region10: #{_graph_convolution.3} parent=5 // pred_check_branch
        %135 = sbr.rel (%p132) target = $region12
      $region11: #{_graph_convolution.3} parent=5 // pred_region
        %s136 = ssub.s32 %s9, 1
        // Predicated region
        $region13: #{_graph_convolution.3} parent=11 // pred_check
          %p137 = pneg %p96
        $region14: #{_graph_convolution.3} parent=11 // pred_check_branch
          %139 = sbr.rel (%p137) target = $region16
        $region15: #{_graph_convolution.3} parent=11 // pred_region
          _
        $region16: #{_graph_convolution.3} parent=11 // pred_fallthru
          _
      $region12: #{_graph_convolution.3} parent=5 // pred_fallthru
        _
      %p140 = scmp.lt.s32.totalorder %s9, 8
      // Predicated region
      $region17: #{_graph_convolution.3} parent=5 // pred_check
        %p141 = pneg %p140
      $region18: #{_graph_convolution.3} parent=5 // pred_check_branch
        %143 = sbr.rel (%p141) target = $region20
      $region19: #{_graph_convolution.3} parent=5 // pred_region
        // Predicated region
        $region21: #{_graph_convolution.3} parent=19 // pred_check
          %p144 = pneg %p43
        $region22: #{_graph_convolution.3} parent=19 // pred_check_branch
          %146 = sbr.rel (%p144) target = $region24
        $region23: #{_graph_convolution.3} parent=19 // pred_region
          %s147 = sand.u32 %s33, 1
          %s148 = sand.u32 %s33, 1
          %s149 = smul.addr %s148, 128
          %s150 = scalar_lea.vmem [#allocation2], %s149
          %s151 = smul.u32 16, %s16
          %s152 = smul.u32 2, %s17
          %s153 = smul.addr %s151, 4
          %s154 = sadd.s32 %s152, %s153
          %s155 = smul.addr %s154, 4
          %s156 = scalar_lea.vmem %s0, %s155
          // Predicated region
          $region25: #{_graph_convolution.3} parent=23 // pred_check
            _
          $region26: #{_graph_convolution.3} parent=23 // pred_check_branch
            %158 = sbr.rel (0) target = $region28
          $region27: #{_graph_convolution.3} parent=23 // pred_region
            // Predicated region
            $region29: #{_graph_convolution.3} parent=27 // pred_check
              _
            $region30: #{_graph_convolution.3} parent=27 // pred_check_branch
              %160 = sbr.rel (0) target = $region32
            $region31: #{_graph_convolution.3} parent=27 // pred_region
              // Predicated region
              $region44: #{_graph_convolution.3} parent=31 // pred_check
                _
              $region45: #{_graph_convolution.3} parent=31 // pred_check_branch
                %206 = sbr.rel (0) target = $region47
              $region46: #{_graph_convolution.3} parent=31 // pred_region
                loop: start=0, step=1, limit=1
                $region48: #{_graph_convolution.3} parent=46 // loop_pre_header
                  _
                $region49: #{_graph_convolution.3} parent=46 // loop_header
                  %s208 = sphi 0, %s212
                  %p209 = scmp.ge.s32.totalorder %s208, 1
                  %s213 = sphi %s156, %s156
                  %s214 = sphi %s150, %s150
                $region50: #{_graph_convolution.3} parent=46 // loop_header_branch
                  %211 = sbr.rel (%p209) target = $region54
                $region51: #{_graph_convolution.3} parent=46 // loop_body
                  %v215 = vld [vmem:[%s213] sm:$0xff]
                  %216 = vst [vmem:[%s214] sm:$0xff] %v215
                  %v217 = vld [vmem:[%s213 + $0x10] sm:$0xff]
                  %218 = vst [vmem:[%s214 + $0x8] sm:$0xff] %v217
                  %v219 = vld [vmem:[%s213 + $0x20] sm:$0xff]
                  %220 = vst [vmem:[%s214 + $0x10] sm:$0xff] %v219
                  %v221 = vld [vmem:[%s213 + $0x30] sm:$0xff]
                  %222 = vst [vmem:[%s214 + $0x18] sm:$0xff] %v221
                  %v223 = vld [vmem:[%s213 + $0x40] sm:$0xff]
                  %224 = vst [vmem:[%s214 + $0x20] sm:$0xff] %v223
                  %v225 = vld [vmem:[%s213 + $0x50] sm:$0xff]
                  %226 = vst [vmem:[%s214 + $0x28] sm:$0xff] %v225
                  %v227 = vld [vmem:[%s213 + $0x60] sm:$0xff]
                  %228 = vst [vmem:[%s214 + $0x30] sm:$0xff] %v227
                  %v229 = vld [vmem:[%s213 + $0x70] sm:$0xff]
                  %230 = vst [vmem:[%s214 + $0x38] sm:$0xff] %v229
                  %v231 = vld [vmem:[%s213 + $0x80] sm:$0xff]
                  %232 = vst [vmem:[%s214 + $0x40] sm:$0xff] %v231
                  %v233 = vld [vmem:[%s213 + $0x90] sm:$0xff]
                  %234 = vst [vmem:[%s214 + $0x48] sm:$0xff] %v233
                  %v235 = vld [vmem:[%s213 + $0xa0] sm:$0xff]
                  %236 = vst [vmem:[%s214 + $0x50] sm:$0xff] %v235
                  %v237 = vld [vmem:[%s213 + $0xb0] sm:$0xff]
                  %238 = vst [vmem:[%s214 + $0x58] sm:$0xff] %v237
                  %v239 = vld [vmem:[%s213 + $0xc0] sm:$0xff]
                  %240 = vst [vmem:[%s214 + $0x60] sm:$0xff] %v239
                  %v241 = vld [vmem:[%s213 + $0xd0] sm:$0xff]
                  %242 = vst [vmem:[%s214 + $0x68] sm:$0xff] %v241
                  %v243 = vld [vmem:[%s213 + $0xe0] sm:$0xff]
                  %244 = vst [vmem:[%s214 + $0x70] sm:$0xff] %v243
                  %v245 = vld [vmem:[%s213 + $0xf0] sm:$0xff]
                  %246 = vst [vmem:[%s214 + $0x78] sm:$0xff] %v245
                $region52: #{_graph_convolution.3} parent=46 // loop_footer
                  %s212 = sadd.s32 1, %s208
                $region53: #{_graph_convolution.3} parent=46 // loop_footer_branch
                  %207 = sbr.rel target = $region49
                $region54: #{_graph_convolution.3} parent=46 // loop_exit
                  _
              $region47: #{_graph_convolution.3} parent=31 // pred_fallthru
                _
              // Predicated region
              $region55: #{_graph_convolution.3} parent=31 // pred_check
                _
              $region56: #{_graph_convolution.3} parent=31 // pred_check_branch
                %248 = sbr.rel target = $region58
              $region57: #{_graph_convolution.3} parent=31 // pred_region
                _
              $region58: #{_graph_convolution.3} parent=31 // pred_fallthru
                _
            $region32: #{_graph_convolution.3} parent=27 // pred_fallthru
              _
            // Predicated region
            $region33: #{_graph_convolution.3} parent=27 // pred_check
              _
            $region34: #{_graph_convolution.3} parent=27 // pred_check_branch
              %162 = sbr.rel target = $region36
            $region35: #{_graph_convolution.3} parent=27 // pred_region
              %s164 = ssub.s32 256, 1
              loop: start=0, step=1, limit=1
              $region37: #{_graph_convolution.3} parent=35 // loop_pre_header
                _
              $region38: #{_graph_convolution.3} parent=35 // loop_header
                %s166 = sphi 0, %s170
                %p167 = scmp.ge.s32.totalorder %s166, 1
                %s171 = sphi %s156, %s156
                %s172 = sphi %s150, %s150
              $region39: #{_graph_convolution.3} parent=35 // loop_header_branch
                %169 = sbr.rel (%p167) target = $region43
              $region40: #{_graph_convolution.3} parent=35 // loop_body
                %v173 = vld [vmem:[%s171] sm:%s164]
                %174 = vst [vmem:[%s172] sm:%s164] %v173
                %v175 = vld [vmem:[%s171 + $0x10] sm:%s164]
                %176 = vst [vmem:[%s172 + $0x8] sm:%s164] %v175
                %v177 = vld [vmem:[%s171 + $0x20] sm:%s164]
                %178 = vst [vmem:[%s172 + $0x10] sm:%s164] %v177
                %v179 = vld [vmem:[%s171 + $0x30] sm:%s164]
                %180 = vst [vmem:[%s172 + $0x18] sm:%s164] %v179
                %v181 = vld [vmem:[%s171 + $0x40] sm:%s164]
                %182 = vst [vmem:[%s172 + $0x20] sm:%s164] %v181
                %v183 = vld [vmem:[%s171 + $0x50] sm:%s164]
                %184 = vst [vmem:[%s172 + $0x28] sm:%s164] %v183
                %v185 = vld [vmem:[%s171 + $0x60] sm:%s164]
                %186 = vst [vmem:[%s172 + $0x30] sm:%s164] %v185
                %v187 = vld [vmem:[%s171 + $0x70] sm:%s164]
                %188 = vst [vmem:[%s172 + $0x38] sm:%s164] %v187
                %v189 = vld [vmem:[%s171 + $0x80] sm:%s164]
                %190 = vst [vmem:[%s172 + $0x40] sm:%s164] %v189
                %v191 = vld [vmem:[%s171 + $0x90] sm:%s164]
                %192 = vst [vmem:[%s172 + $0x48] sm:%s164] %v191
                %v193 = vld [vmem:[%s171 + $0xa0] sm:%s164]
                %194 = vst [vmem:[%s172 + $0x50] sm:%s164] %v193
                %v195 = vld [vmem:[%s171 + $0xb0] sm:%s164]
                %196 = vst [vmem:[%s172 + $0x58] sm:%s164] %v195
                %v197 = vld [vmem:[%s171 + $0xc0] sm:%s164]
                %198 = vst [vmem:[%s172 + $0x60] sm:%s164] %v197
                %v199 = vld [vmem:[%s171 + $0xd0] sm:%s164]
                %200 = vst [vmem:[%s172 + $0x68] sm:%s164] %v199
                %v201 = vld [vmem:[%s171 + $0xe0] sm:%s164]
                %202 = vst [vmem:[%s172 + $0x70] sm:%s164] %v201
                %v203 = vld [vmem:[%s171 + $0xf0] sm:%s164]
                %204 = vst [vmem:[%s172 + $0x78] sm:%s164] %v203
              $region41: #{_graph_convolution.3} parent=35 // loop_footer
                %s170 = sadd.s32 1, %s166
              $region42: #{_graph_convolution.3} parent=35 // loop_footer_branch
                %165 = sbr.rel target = $region38
              $region43: #{_graph_convolution.3} parent=35 // loop_exit
                _
            $region36: #{_graph_convolution.3} parent=27 // pred_fallthru
              _
          $region28: #{_graph_convolution.3} parent=23 // pred_fallthru
            _
          %249 = vnop
        $region24: #{_graph_convolution.3} parent=19 // pred_fallthru
          _
        // Predicated region
        $region59: #{_graph_convolution.3} parent=19 // pred_check
          %p250 = pneg %p69
        $region60: #{_graph_convolution.3} parent=19 // pred_check_branch
          %252 = sbr.rel (%p250) target = $region62
        $region61: #{_graph_convolution.3} parent=19 // pred_region
          %s253 = smul.u32 32, %s17
          %p254 = scmp.lt.s32.totalorder %s253, 63
          %s255 = scalar_select %p254, %s253, 63
          %s256 = smul.addr %s255, 4
          %s257 = scalar_lea.vmem %s1, %s256
          %s258 = smul.u32 32, %s17
        $region62: #{_graph_convolution.3} parent=19 // pred_fallthru
          _
      $region20: #{_graph_convolution.3} parent=5 // pred_fallthru
        _
      %p259 = scmp.le.s32.totalorder 1, %s9
      %p260 = scmp.lt.s32.totalorder %s9, 9
      %p261 = pnand %p259, %p260
      %p262 = pneg %p261
      // Predicated region
      $region63: #{_graph_convolution.3} parent=5 // pred_check
        _
      $region64: #{_graph_convolution.3} parent=5 // pred_check_branch
        %264 = sbr.rel (%p261) target = $region66
      $region65: #{_graph_convolution.3} parent=5 // pred_region
        %s265 = ssub.s32 %s9, 1
        %s266 = sand.u32 %s36, 1
        %s267 = sand.u32 %s36, 1
        %s268 = smul.addr %s267, 128
        %s269 = scalar_lea.vmem [#allocation2], %s268
        // Predicated region
        $region67: #{_graph_convolution.3} parent=65 // pred_check
          %p270 = pneg %p49
        $region68: #{_graph_convolution.3} parent=65 // pred_check_branch
          %272 = sbr.rel (%p270) target = $region70
        $region69: #{_graph_convolution.3} parent=65 // pred_region
          _
        $region70: #{_graph_convolution.3} parent=65 // pred_fallthru
          _
        %s273 = sand.u32 %s36, 1
        %s274 = sand.u32 %s36, 1
        %s275 = smul.addr %s274, 128
        %s276 = scalar_lea.vmem [#allocation2], %s275
        %p277 = pneg %p49
        %p278 = pneg %p46
        %s279 = smul.u32 32, %s19
        %p280 = scmp.lt.s32.totalorder %s279, 63
        %s281 = scalar_select %p280, %s279, 63
        %s282 = smul.addr %s281, 4
        %s283 = scalar_lea.vmem %s1, %s282
        %p284 = pneg %p75
        %p285 = pneg %p72
        %p286 = pneg %p96
        %p287 = pneg %p93
        %p288 = pneg %p122
        %p289 = pneg %p119
        %s290 = smul.u32 16, %s18
        %p291 = scmp.lt.s32.totalorder %s290, 63
        %s292 = scalar_select %p291, %s290, 63
        %s293 = smul.addr %s292, 8
        %s294 = scalar_lea.vmem %s3, %s293
        %s295 = smul.u32 16, %s18
        %s296 = smul.u32 2, %s19
        %s297 = smul.u32 32, %s19
        %p298 = scmp.lt.s32.totalorder %s297, 63
        %s299 = scalar_select %p298, %s297, 63
        %s300 = smul.addr %s299, 4
        %s301 = scalar_lea.vmem %s1, %s300
        %s302 = smul.u32 32, %s19
        %s303 = smul.u32 16, %s18
        %p304 = scmp.lt.s32.totalorder %s303, 63
        %s305 = scalar_select %p304, %s303, 63
        %s306 = smul.addr %s305, 8
        %s307 = scalar_lea.vmem %s3, %s306
        %s308 = smul.u32 16, %s18
        %p309 = scmp.eq.s32.totalorder %s19, 0
        // Predicated region
        $region71: #{_graph_convolution.3} parent=65 // pred_check
          %p310 = pneg %p309
        $region72: #{_graph_convolution.3} parent=65 // pred_check_branch
          %312 = sbr.rel (%p310) target = $region74
        $region73: #{_graph_convolution.3} parent=65 // pred_region
          %313 = vst [vmem:[%s307] sm:$0xff] 0.0
          %314 = vst [vmem:[%s307 + $0x8] sm:$0xff] 0.0
          %315 = vst [vmem:[%s307 + $0x10] sm:$0xff] 0.0
          %316 = vst [vmem:[%s307 + $0x18] sm:$0xff] 0.0
          %317 = vst [vmem:[%s307 + $0x20] sm:$0xff] 0.0
          %318 = vst [vmem:[%s307 + $0x28] sm:$0xff] 0.0
          %319 = vst [vmem:[%s307 + $0x30] sm:$0xff] 0.0
          %320 = vst [vmem:[%s307 + $0x38] sm:$0xff] 0.0
          %321 = vst [vmem:[%s307 + $0x40] sm:$0xff] 0.0
          %322 = vst [vmem:[%s307 + $0x48] sm:$0xff] 0.0
          %323 = vst [vmem:[%s307 + $0x50] sm:$0xff] 0.0
          %324 = vst [vmem:[%s307 + $0x58] sm:$0xff] 0.0
          %325 = vst [vmem:[%s307 + $0x60] sm:$0xff] 0.0
          %326 = vst [vmem:[%s307 + $0x68] sm:$0xff] 0.0
          %327 = vst [vmem:[%s307 + $0x70] sm:$0xff] 0.0
          %328 = vst [vmem:[%s307 + $0x78] sm:$0xff] 0.0
        $region74: #{_graph_convolution.3} parent=65 // pred_fallthru
          _
        %v329 = vld [vmem:[%s307] sm:$0xff]
        %v330 = vld [vmem:[%s307 + $0x8] sm:$0xff]
        %v331 = vld [vmem:[%s307 + $0x10] sm:$0xff]
        %v332 = vld [vmem:[%s307 + $0x18] sm:$0xff]
        %v333 = vld [vmem:[%s307 + $0x20] sm:$0xff]
        %v334 = vld [vmem:[%s307 + $0x28] sm:$0xff]
        %v335 = vld [vmem:[%s307 + $0x30] sm:$0xff]
        %v336 = vld [vmem:[%s307 + $0x38] sm:$0xff]
        %v337 = vld [vmem:[%s307 + $0x40] sm:$0xff]
        %v338 = vld [vmem:[%s307 + $0x48] sm:$0xff]
        %v339 = vld [vmem:[%s307 + $0x50] sm:$0xff]
        %v340 = vld [vmem:[%s307 + $0x58] sm:$0xff]
        %v341 = vld [vmem:[%s307 + $0x60] sm:$0xff]
        %v342 = vld [vmem:[%s307 + $0x68] sm:$0xff]
        %v343 = vld [vmem:[%s307 + $0x70] sm:$0xff]
        %v344 = vld [vmem:[%s307 + $0x78] sm:$0xff]
        %v345 = vld [vmem:[%s269] sm:$0xff]
        %v346 = vld [vmem:[%s269 + $0x8] sm:$0xff]
        %v347 = vld [vmem:[%s269 + $0x10] sm:$0xff]
        %v348 = vld [vmem:[%s269 + $0x18] sm:$0xff]
        %v349 = vld [vmem:[%s269 + $0x20] sm:$0xff]
        %v350 = vld [vmem:[%s269 + $0x28] sm:$0xff]
        %v351 = vld [vmem:[%s269 + $0x30] sm:$0xff]
        %v352 = vld [vmem:[%s269 + $0x38] sm:$0xff]
        %v353 = vld [vmem:[%s269 + $0x40] sm:$0xff]
        %v354 = vld [vmem:[%s269 + $0x48] sm:$0xff]
        %v355 = vld [vmem:[%s269 + $0x50] sm:$0xff]
        %v356 = vld [vmem:[%s269 + $0x58] sm:$0xff]
        %v357 = vld [vmem:[%s269 + $0x60] sm:$0xff]
        %v358 = vld [vmem:[%s269 + $0x68] sm:$0xff]
        %v359 = vld [vmem:[%s269 + $0x70] sm:$0xff]
        %v360 = vld [vmem:[%s269 + $0x78] sm:$0xff]
        %v361 = vld [vmem:[%s301] sm:$0xf]
        %v362 = vld [vmem:[%s301 + $0x4] sm:$0xf]
        %v363 = vld [vmem:[%s301 + $0x8] sm:$0xf]
        %v364 = vld [vmem:[%s301 + $0xc] sm:$0xf]
        %v365 = vld [vmem:[%s301 + $0x10] sm:$0xf]
        %v366 = vld [vmem:[%s301 + $0x14] sm:$0xf]
        %v367 = vld [vmem:[%s301 + $0x18] sm:$0xf]
        %v368 = vld [vmem:[%s301 + $0x1c] sm:$0xf]
        %v369 = vld [vmem:[%s301 + $0x20] sm:$0xf]
        %v370 = vld [vmem:[%s301 + $0x24] sm:$0xf]
        %v371 = vld [vmem:[%s301 + $0x28] sm:$0xf]
        %v372 = vld [vmem:[%s301 + $0x2c] sm:$0xf]
        %v373 = vld [vmem:[%s301 + $0x30] sm:$0xf]
        %v374 = vld [vmem:[%s301 + $0x34] sm:$0xf]
        %v375 = vld [vmem:[%s301 + $0x38] sm:$0xf]
        %v376 = vld [vmem:[%s301 + $0x3c] sm:$0xf]
        %v377 = vld [vmem:[%s301 + $0x40] sm:$0xf]
        %v378 = vld [vmem:[%s301 + $0x44] sm:$0xf]
        %v379 = vld [vmem:[%s301 + $0x48] sm:$0xf]
        %v380 = vld [vmem:[%s301 + $0x4c] sm:$0xf]
        %v381 = vld [vmem:[%s301 + $0x50] sm:$0xf]
        %v382 = vld [vmem:[%s301 + $0x54] sm:$0xf]
        %v383 = vld [vmem:[%s301 + $0x58] sm:$0xf]
        %v384 = vld [vmem:[%s301 + $0x5c] sm:$0xf]
        %v385 = vld [vmem:[%s301 + $0x60] sm:$0xf]
        %v386 = vld [vmem:[%s301 + $0x64] sm:$0xf]
        %v387 = vld [vmem:[%s301 + $0x68] sm:$0xf]
        %v388 = vld [vmem:[%s301 + $0x6c] sm:$0xf]
        %v389 = vld [vmem:[%s301 + $0x70] sm:$0xf]
        %v390 = vld [vmem:[%s301 + $0x74] sm:$0xf]
        %v391 = vld [vmem:[%s301 + $0x78] sm:$0xf]
        %v392 = vld [vmem:[%s301 + $0x7c] sm:$0xf]
        %v409 = vunpack.c.l.b16 %v345
        %v410 = vunpack.c.h.b16 %v345
        %v411 = vunpack.c.l.b16 %v346
        %v412 = vunpack.c.h.b16 %v346
        %v413 = vunpack.c.l.b16 %v347
        %v414 = vunpack.c.h.b16 %v347
        %v415 = vunpack.c.l.b16 %v348
        %v416 = vunpack.c.h.b16 %v348
        %v417 = vunpack.c.l.b16 %v349
        %v418 = vunpack.c.h.b16 %v349
        %v419 = vunpack.c.l.b16 %v350
        %v420 = vunpack.c.h.b16 %v350
        %v421 = vunpack.c.l.b16 %v351
        %v422 = vunpack.c.h.b16 %v351
        %v423 = vunpack.c.l.b16 %v352
        %v424 = vunpack.c.h.b16 %v352
        %v425 = vunpack.c.l.b16 %v353
        %v426 = vunpack.c.h.b16 %v353
        %v427 = vunpack.c.l.b16 %v354
        %v428 = vunpack.c.h.b16 %v354
        %v429 = vunpack.c.l.b16 %v355
        %v430 = vunpack.c.h.b16 %v355
        %v431 = vunpack.c.l.b16 %v356
        %v432 = vunpack.c.h.b16 %v356
        %v433 = vunpack.c.l.b16 %v357
        %v434 = vunpack.c.h.b16 %v357
        %v435 = vunpack.c.l.b16 %v358
        %v436 = vunpack.c.h.b16 %v358
        %v437 = vunpack.c.l.b16 %v359
        %v438 = vunpack.c.h.b16 %v359
        %v439 = vunpack.c.l.b16 %v360
        %v440 = vunpack.c.h.b16 %v360
        %v441 = vpack.c.b16 %v411, %v409
        %v442 = vpack.c.b16 %v412, %v410
        %v443 = vpack.c.b16 %v415, %v413
        %v444 = vpack.c.b16 %v416, %v414
        %v445 = vpack.c.b16 %v419, %v417
        %v446 = vpack.c.b16 %v420, %v418
        %v447 = vpack.c.b16 %v423, %v421
        %v448 = vpack.c.b16 %v424, %v422
        %v449 = vpack.c.b16 %v427, %v425
        %v450 = vpack.c.b16 %v428, %v426
        %v451 = vpack.c.b16 %v431, %v429
        %v452 = vpack.c.b16 %v432, %v430
        %v453 = vpack.c.b16 %v435, %v433
        %v454 = vpack.c.b16 %v436, %v434
        %v455 = vpack.c.b16 %v439, %v437
        %v456 = vpack.c.b16 %v440, %v438
        %v505 = vunpack.c.l.b16 %v361
        %v506 = vunpack.c.l.b16 %v362
        %v507 = vunpack.c.l.b16 %v363
        %v508 = vunpack.c.l.b16 %v364
        %v509 = vunpack.c.l.b16 %v365
        %v510 = vunpack.c.l.b16 %v366
        %v511 = vunpack.c.l.b16 %v367
        %v512 = vunpack.c.l.b16 %v368
        %v513 = vunpack.c.l.b16 %v369
        %v514 = vunpack.c.l.b16 %v370
        %v515 = vunpack.c.l.b16 %v371
        %v516 = vunpack.c.l.b16 %v372
        %v517 = vunpack.c.l.b16 %v373
        %v518 = vunpack.c.l.b16 %v374
        %v519 = vunpack.c.l.b16 %v375
        %v520 = vunpack.c.l.b16 %v376
        %v521 = vunpack.c.l.b16 %v377
        %v522 = vunpack.c.l.b16 %v378
        %v523 = vunpack.c.l.b16 %v379
        %v524 = vunpack.c.l.b16 %v380
        %v525 = vunpack.c.l.b16 %v381
        %v526 = vunpack.c.l.b16 %v382
        %v527 = vunpack.c.l.b16 %v383
        %v528 = vunpack.c.l.b16 %v384
        %v529 = vunpack.c.l.b16 %v385
        %v530 = vunpack.c.l.b16 %v386
        %v531 = vunpack.c.l.b16 %v387
        %v532 = vunpack.c.l.b16 %v388
        %v533 = vunpack.c.l.b16 %v389
        %v534 = vunpack.c.l.b16 %v390
        %v535 = vunpack.c.l.b16 %v391
        %v536 = vunpack.c.l.b16 %v392
        %v537 = vpack.c.b16 %v506, %v505
        %v538 = vpack.c.b16 %v508, %v507
        %v539 = vpack.c.b16 %v510, %v509
        %v540 = vpack.c.b16 %v512, %v511
        %v541 = vpack.c.b16 %v514, %v513
        %v542 = vpack.c.b16 %v516, %v515
        %v543 = vpack.c.b16 %v518, %v517
        %v544 = vpack.c.b16 %v520, %v519
        %v545 = vpack.c.b16 %v522, %v521
        %v546 = vpack.c.b16 %v524, %v523
        %v547 = vpack.c.b16 %v526, %v525
        %v548 = vpack.c.b16 %v528, %v527
        %v549 = vpack.c.b16 %v530, %v529
        %v550 = vpack.c.b16 %v532, %v531
        %v551 = vpack.c.b16 %v534, %v533
        %v552 = vpack.c.b16 %v536, %v535
        %569 = vmatpush.bf16.msra.mxu0 %v544
        %570 = vmatpush.bf16.msra.mxu0 %v543
        %571 = vmatpush.bf16.msra.mxu0 %v542
        %572 = vmatpush.bf16.msra.mxu0 %v541
        %573 = vmatpush.bf16.msra.mxu0 %v540
        %574 = vmatpush.bf16.msra.mxu0 %v539
        %575 = vmatpush.bf16.msra.mxu0 %v538
        %576 = vmatpush.bf16.msra.mxu0 %v537
        %577 = vmatmul.bf16.gmra.mxu0 %v441
        %v578 = vpop.f32.mrf.mxu0
        %v579 = vadd.f32 0.0, %v578
        %v580 = vpop.f32.mrf.mxu0
        %v581 = vadd.f32 0.0, %v580
        %582 = vmatmul.bf16.gmra.mxu0 %v443
        %v583 = vpop.f32.mrf.mxu0
        %v584 = vadd.f32 0.0, %v583
        %v585 = vpop.f32.mrf.mxu0
        %v586 = vadd.f32 0.0, %v585
        %587 = vmatmul.bf16.gmra.mxu0 %v445
        %v588 = vpop.f32.mrf.mxu0
        %v589 = vadd.f32 0.0, %v588
        %v590 = vpop.f32.mrf.mxu0
        %v591 = vadd.f32 0.0, %v590
        %592 = vmatmul.bf16.gmra.mxu0 %v447
        %v593 = vpop.f32.mrf.mxu0
        %v594 = vadd.f32 0.0, %v593
        %v595 = vpop.f32.mrf.mxu0
        %v596 = vadd.f32 0.0, %v595
        %597 = vmatmul.bf16.gmra.mxu0 %v449
        %v598 = vpop.f32.mrf.mxu0
        %v599 = vadd.f32 0.0, %v598
        %v600 = vpop.f32.mrf.mxu0
        %v601 = vadd.f32 0.0, %v600
        %602 = vmatmul.bf16.gmra.mxu0 %v451
        %v603 = vpop.f32.mrf.mxu0
        %v604 = vadd.f32 0.0, %v603
        %v605 = vpop.f32.mrf.mxu0
        %v606 = vadd.f32 0.0, %v605
        %607 = vmatmul.bf16.gmra.mxu0 %v453
        %v608 = vpop.f32.mrf.mxu0
        %v609 = vadd.f32 0.0, %v608
        %v610 = vpop.f32.mrf.mxu0
        %v611 = vadd.f32 0.0, %v610
        %612 = vmatmul.bf16.gmra.mxu0 %v455
        %v613 = vpop.f32.mrf.mxu0
        %v614 = vadd.f32 0.0, %v613
        %v615 = vpop.f32.mrf.mxu0
        %v616 = vadd.f32 0.0, %v615
        %617 = vdwg.mxu0
        %618 = vmatpush.bf16.msra.mxu0 %v552
        %619 = vmatpush.bf16.msra.mxu0 %v551
        %620 = vmatpush.bf16.msra.mxu0 %v550
        %621 = vmatpush.bf16.msra.mxu0 %v549
        %622 = vmatpush.bf16.msra.mxu0 %v548
        %623 = vmatpush.bf16.msra.mxu0 %v547
        %624 = vmatpush.bf16.msra.mxu0 %v546
        %625 = vmatpush.bf16.msra.mxu0 %v545
        %626 = vmatmul.bf16.gmra.mxu0 %v442
        %v627 = vpop.f32.mrf.mxu0
        %v628 = vadd.f32 %v579, %v627
        %v629 = vpop.f32.mrf.mxu0
        %v630 = vadd.f32 %v581, %v629
        %631 = vmatmul.bf16.gmra.mxu0 %v444
        %v632 = vpop.f32.mrf.mxu0
        %v633 = vadd.f32 %v584, %v632
        %v634 = vpop.f32.mrf.mxu0
        %v635 = vadd.f32 %v586, %v634
        %636 = vmatmul.bf16.gmra.mxu0 %v446
        %v637 = vpop.f32.mrf.mxu0
        %v638 = vadd.f32 %v589, %v637
        %v639 = vpop.f32.mrf.mxu0
        %v640 = vadd.f32 %v591, %v639
        %641 = vmatmul.bf16.gmra.mxu0 %v448
        %v642 = vpop.f32.mrf.mxu0
        %v643 = vadd.f32 %v594, %v642
        %v644 = vpop.f32.mrf.mxu0
        %v645 = vadd.f32 %v596, %v644
        %646 = vmatmul.bf16.gmra.mxu0 %v450
        %v647 = vpop.f32.mrf.mxu0
        %v648 = vadd.f32 %v599, %v647
        %v649 = vpop.f32.mrf.mxu0
        %v650 = vadd.f32 %v601, %v649
        %651 = vmatmul.bf16.gmra.mxu0 %v452
        %v652 = vpop.f32.mrf.mxu0
        %v653 = vadd.f32 %v604, %v652
        %v654 = vpop.f32.mrf.mxu0
        %v655 = vadd.f32 %v606, %v654
        %656 = vmatmul.bf16.gmra.mxu0 %v454
        %v657 = vpop.f32.mrf.mxu0
        %v658 = vadd.f32 %v609, %v657
        %v659 = vpop.f32.mrf.mxu0
        %v660 = vadd.f32 %v611, %v659
        %661 = vmatmul.bf16.gmra.mxu0 %v456
        %v662 = vpop.f32.mrf.mxu0
        %v663 = vadd.f32 %v614, %v662
        %v664 = vpop.f32.mrf.mxu0
        %v665 = vadd.f32 %v616, %v664
        %666 = vdwg.mxu0
        %v667 = vadd.f32 %v329, %v628
        %v668 = vadd.f32 %v330, %v630
        %v669 = vadd.f32 %v331, %v633
        %v670 = vadd.f32 %v332, %v635
        %v671 = vadd.f32 %v333, %v638
        %v672 = vadd.f32 %v334, %v640
        %v673 = vadd.f32 %v335, %v643
        %v674 = vadd.f32 %v336, %v645
        %v675 = vadd.f32 %v337, %v648
        %v676 = vadd.f32 %v338, %v650
        %v677 = vadd.f32 %v339, %v653
        %v678 = vadd.f32 %v340, %v655
        %v679 = vadd.f32 %v341, %v658
        %v680 = vadd.f32 %v342, %v660
        %v681 = vadd.f32 %v343, %v663
        %v682 = vadd.f32 %v344, %v665
        %683 = vst [vmem:[%s307] sm:$0xff] %v667
        %684 = vst [vmem:[%s307 + $0x8] sm:$0xff] %v668
        %685 = vst [vmem:[%s307 + $0x10] sm:$0xff] %v669
        %686 = vst [vmem:[%s307 + $0x18] sm:$0xff] %v670
        %687 = vst [vmem:[%s307 + $0x20] sm:$0xff] %v671
        %688 = vst [vmem:[%s307 + $0x28] sm:$0xff] %v672
        %689 = vst [vmem:[%s307 + $0x30] sm:$0xff] %v673
        %690 = vst [vmem:[%s307 + $0x38] sm:$0xff] %v674
        %691 = vst [vmem:[%s307 + $0x40] sm:$0xff] %v675
        %692 = vst [vmem:[%s307 + $0x48] sm:$0xff] %v676
        %693 = vst [vmem:[%s307 + $0x50] sm:$0xff] %v677
        %694 = vst [vmem:[%s307 + $0x58] sm:$0xff] %v678
        %695 = vst [vmem:[%s307 + $0x60] sm:$0xff] %v679
        %696 = vst [vmem:[%s307 + $0x68] sm:$0xff] %v680
        %697 = vst [vmem:[%s307 + $0x70] sm:$0xff] %v681
        %698 = vst [vmem:[%s307 + $0x78] sm:$0xff] %v682
        %p699 = scmp.eq.s32.totalorder %s19, 1
        // Predicated region
        $region75: #{_graph_convolution.3} parent=65 // pred_check
          %p700 = pneg %p699
        $region76: #{_graph_convolution.3} parent=65 // pred_check_branch
          %702 = sbr.rel (%p700) target = $region78
        $region77: #{_graph_convolution.3} parent=65 // pred_region
          %v703 = vld [vmem:[%s307] sm:$0xff]
          %v704 = vld [vmem:[%s307 + $0x8] sm:$0xff]
          %v705 = vld [vmem:[%s307 + $0x10] sm:$0xff]
          %v706 = vld [vmem:[%s307 + $0x18] sm:$0xff]
          %v707 = vld [vmem:[%s307 + $0x20] sm:$0xff]
          %v708 = vld [vmem:[%s307 + $0x28] sm:$0xff]
          %v709 = vld [vmem:[%s307 + $0x30] sm:$0xff]
          %v710 = vld [vmem:[%s307 + $0x38] sm:$0xff]
          %v711 = vld [vmem:[%s307 + $0x40] sm:$0xff]
          %v712 = vld [vmem:[%s307 + $0x48] sm:$0xff]
          %v713 = vld [vmem:[%s307 + $0x50] sm:$0xff]
          %v714 = vld [vmem:[%s307 + $0x58] sm:$0xff]
          %v715 = vld [vmem:[%s307 + $0x60] sm:$0xff]
          %v716 = vld [vmem:[%s307 + $0x68] sm:$0xff]
          %v717 = vld [vmem:[%s307 + $0x70] sm:$0xff]
          %v718 = vld [vmem:[%s307 + $0x78] sm:$0xff]
          %v719 = vld [vmem:[%s2] sm:$0x1]
          %v721 = vperm.slane %v719, 0
          %v723 = vadd.f32 %v703, %v721
          %v724 = vadd.f32 %v704, %v721
          %v725 = vadd.f32 %v705, %v721
          %v726 = vadd.f32 %v706, %v721
          %v727 = vadd.f32 %v707, %v721
          %v728 = vadd.f32 %v708, %v721
          %v729 = vadd.f32 %v709, %v721
          %v730 = vadd.f32 %v710, %v721
          %v731 = vadd.f32 %v711, %v721
          %v732 = vadd.f32 %v712, %v721
          %v733 = vadd.f32 %v713, %v721
          %v734 = vadd.f32 %v714, %v721
          %v735 = vadd.f32 %v715, %v721
          %v736 = vadd.f32 %v716, %v721
          %v737 = vadd.f32 %v717, %v721
          %v738 = vadd.f32 %v718, %v721
          %739 = vst [vmem:[%s307] sm:$0xff] %v723
          %740 = vst [vmem:[%s307 + $0x8] sm:$0xff] %v724
          %741 = vst [vmem:[%s307 + $0x10] sm:$0xff] %v725
          %742 = vst [vmem:[%s307 + $0x18] sm:$0xff] %v726
          %743 = vst [vmem:[%s307 + $0x20] sm:$0xff] %v727
          %744 = vst [vmem:[%s307 + $0x28] sm:$0xff] %v728
          %745 = vst [vmem:[%s307 + $0x30] sm:$0xff] %v729
          %746 = vst [vmem:[%s307 + $0x38] sm:$0xff] %v730
          %747 = vst [vmem:[%s307 + $0x40] sm:$0xff] %v731
          %748 = vst [vmem:[%s307 + $0x48] sm:$0xff] %v732
          %749 = vst [vmem:[%s307 + $0x50] sm:$0xff] %v733
          %750 = vst [vmem:[%s307 + $0x58] sm:$0xff] %v734
          %751 = vst [vmem:[%s307 + $0x60] sm:$0xff] %v735
          %752 = vst [vmem:[%s307 + $0x68] sm:$0xff] %v736
          %753 = vst [vmem:[%s307 + $0x70] sm:$0xff] %v737
          %754 = vst [vmem:[%s307 + $0x78] sm:$0xff] %v738
        $region78: #{_graph_convolution.3} parent=65 // pred_fallthru
          _
        %s755 = smul.u32 16, %s18
        %p756 = scmp.lt.s32.totalorder %s755, 63
        %s757 = scalar_select %p756, %s755, 63
        %s758 = smul.addr %s757, 8
        %s759 = scalar_lea.vmem %s3, %s758
        // Predicated region
        $region79: #{_graph_convolution.3} parent=65 // pred_check
          %p760 = pneg %p119
        $region80: #{_graph_convolution.3} parent=65 // pred_check_branch
          %762 = sbr.rel (%p760) target = $region82
        $region81: #{_graph_convolution.3} parent=65 // pred_region
          %s763 = smul.u32 16, %s18
        $region82: #{_graph_convolution.3} parent=65 // pred_fallthru
          _
      $region66: #{_graph_convolution.3} parent=5 // pred_fallthru
        _
      %p764 = scmp.le.s32.totalorder 2, %s9
      // Predicated region
      $region83: #{_graph_convolution.3} parent=5 // pred_check
        %p765 = pneg %p764
      $region84: #{_graph_convolution.3} parent=5 // pred_check_branch
        %767 = sbr.rel (%p765) target = $region86
      $region85: #{_graph_convolution.3} parent=5 // pred_region
        %s768 = ssub.s32 %s9, 2
        // Predicated region
        $region87: #{_graph_convolution.3} parent=85 // pred_check
          %p769 = pneg %p125
        $region88: #{_graph_convolution.3} parent=85 // pred_check_branch
          %771 = sbr.rel (%p769) target = $region90
        $region89: #{_graph_convolution.3} parent=85 // pred_region
          %s772 = smul.u32 16, %s20
          %p773 = scmp.lt.s32.totalorder %s772, 63
          %s774 = scalar_select %p773, %s772, 63
          %s775 = smul.addr %s774, 8
          %s776 = scalar_lea.vmem %s3, %s775
        $region90: #{_graph_convolution.3} parent=85 // pred_fallthru
          _
      $region86: #{_graph_convolution.3} parent=5 // pred_fallthru
        _
    $region6: #{_graph_convolution.3} parent=1 // loop_footer
      %s13 = sadd.s32 1, %s9
    $region7: #{_graph_convolution.3} parent=1 // loop_footer_branch
      %8 = sbr.rel target = $region3
    $region8: #{_graph_convolution.3} parent=1 // loop_exit
      _

</llo_original>
